<compile_context>
chip_gen: v7x
topology: tpu7x:2x2x1
jax: 0.10.0
libtpu: 0.0.40
codegen_flags: <defaults>
</compile_context>

<pallas_src>
import math
import jax
import jax.numpy as jnp
from jax.experimental import pallas as pl
from jax.experimental.pallas import tpu as pltpu

IN_DIM = 256
OUT_DIMS = (768, 1024, 1024, 2048, 1600, 4096, 1280)
NUM_CH = len(OUT_DIMS)
TILE_N = 1024                                                      # sweet spot: DMA/step ~= step overhead
PAD_DIMS = tuple(pl.cdiv(n, TILE_N) * TILE_N for n in OUT_DIMS)    # per-channel padded widths
N_PAD = sum(PAD_DIMS)                                              # 13312
N_TOTAL = sum(OUT_DIMS)                                            # 11840
NUM_TILES = N_PAD // TILE_N                                        # 13


def _mc_kernel(cid_ref, x_ref, w_ref, b_ref, o_ref):
    # cid_ref : (NUM_TILES,) int32 in SMEM  -- tile -> channel map (scalar prefetch)
    # x_ref   : (7, B, 256) bf16, VMEM-resident (constant index_map)
    # w_ref   : (256, TILE_N) bf16          -- pre-transposed packed weight tile
    # b_ref   : (1, TILE_N) f32             -- packed bias tile
    # o_ref   : (B, TILE_N) f32
    j = pl.program_id(0)
    c = cid_ref[j]                       # which channel this output tile belongs to
    x = x_ref[c]                         # (B, 256) bf16, dynamic first-axis select
    acc = jnp.dot(x, w_ref[...], preferred_element_type=jnp.float32)  # (B, TILE_N) f32
    o_ref[...] = (acc + b_ref[...]).astype(o_ref.dtype)


def multi_channel_forward(x, w_pad_t, b_pad, cid):
    """x: (B, 7, 256) f32 -> (B, 11840) f32."""
    B = x.shape[0]
    # Channel-major, bf16 copy of x (tiny: 7*B*256*2 bytes) kept VMEM-resident.
    x_t = jnp.transpose(x, (1, 0, 2)).astype(jnp.bfloat16)   # (7, B, 256)

    out_pad = pl.pallas_call(
        _mc_kernel,
        out_shape=jax.ShapeDtypeStruct((B, N_PAD), jnp.float32),
        grid_spec=pltpu.PrefetchScalarGridSpec(
            num_scalar_prefetch=1,
            grid=(NUM_TILES,),
            in_specs=[
                # full x, constant block index -> DMA'd once, resident in VMEM
                pl.BlockSpec((NUM_CH, B, IN_DIM), lambda j, cid: (0, 0, 0)),
                # one TILE_N-wide column tile of the pre-transposed packed weights
                pl.BlockSpec((IN_DIM, TILE_N), lambda j, cid: (0, j)),
                # matching bias tile (pipelined with the grid, no in-kernel slicing)
                pl.BlockSpec((1, TILE_N), lambda j, cid: (0, j)),
            ],
            out_specs=pl.BlockSpec((B, TILE_N), lambda j, cid: (0, j)),
        ),
        compiler_params=pltpu.CompilerParams(
            dimension_semantics=("parallel",)),   # independent tiles -> megacore OK
    )(cid, x_t, w_pad_t, b_pad)

    # Strip the zero-padded columns (channels 0, 4, 6 at TILE_N=1024) and
    # reproduce torch.cat(out1..out7, dim=1) exactly.
    pieces, off = [], 0
    for real, padded in zip(OUT_DIMS, PAD_DIMS):
        pieces.append(out_pad[:, off:off + real])
        off += padded
    return jnp.concatenate(pieces, axis=1)


def init_params(key):
    """Deterministic PyTorch-default-style init: U(-1/sqrt(fan_in), +...)."""
    bound = 1.0 / math.sqrt(IN_DIM)
    ws, bs = [], []
    for n in OUT_DIMS:
        key, kw, kb = jax.random.split(key, 3)
        ws.append(jax.random.uniform(kw, (n, IN_DIM), jnp.float32, -bound, bound))
        bs.append(jax.random.uniform(kb, (n,), jnp.float32, -bound, bound))

    # Pack (with zero padding per channel to a multiple of TILE_N) into single
    # arrays.  Weights are stored PRE-TRANSPOSED (IN_DIM, N_PAD) in bf16 so the
    # kernel never transposes; bias stays f32.
    w_cols, b_rows, cid_rows = [], [], []
    for i, (w, b, real, padded) in enumerate(zip(ws, bs, OUT_DIMS, PAD_DIMS)):
        pad = padded - real
        w_cols.append(w.T)                                   # (IN_DIM, real)
        b_rows.append(b)
        if pad:
            w_cols.append(jnp.zeros((IN_DIM, pad), jnp.float32))
            b_rows.append(jnp.zeros((pad,), jnp.float32))
        cid_rows.append(jnp.full((padded // TILE_N,), i, jnp.int32))

    w_pad_t = jnp.concatenate(w_cols, axis=1).astype(jnp.bfloat16)  # (256, N_PAD)
    b_pad = jnp.concatenate(b_rows, axis=0)[None, :]                # (1, N_PAD) f32
    cid = jnp.concatenate(cid_rows, axis=0)                         # (NUM_TILES,)
    return ws, bs, w_pad_t, b_pad, cid


def reference_forward(x, ws, bs):
    outs = [x[:, i] @ w.T + b for i, (w, b) in enumerate(zip(ws, bs))]
    return jnp.concatenate(outs, axis=1)


if __name__ == "__main__":
    key = jax.random.PRNGKey(0)
    key, kx = jax.random.split(key)

    B = 8
    x = jax.random.normal(kx, (B, NUM_CH, IN_DIM), jnp.float32)

    ws, bs, w_pad_t, b_pad, cid = init_params(key)

    out = multi_channel_forward(x, w_pad_t, b_pad, cid)
    out = jax.block_until_ready(out)

    ref = reference_forward(x, ws, bs)
    assert out.shape == (B, N_TOTAL), out.shape
    # bf16 weights/activations with f32 accumulation: relaxed tolerance vs f32 ref.
    assert jnp.allclose(out, ref, atol=2e-2, rtol=2e-2), \
        float(jnp.max(jnp.abs(out - ref)))

    print("KERNEL_OK")
</pallas_src>

<mosaic_0001>
module attributes {stable_mosaic.version = 11 : i64} {
  func.func @_mc_kernel(%arg0: i32, %arg1: memref<13xi32, #tpu.memory_space<smem>>, %arg2: memref<7x8x256xbf16, #tpu.memory_space<vmem>>, %arg3: memref<256x1024xbf16, #tpu.memory_space<vmem>>, %arg4: memref<1x1024xf32, #tpu.memory_space<vmem>>, %arg5: memref<8x1024xf32, #tpu.memory_space<vmem>>) attributes {dimension_semantics = [#tpu.dimension_semantics<parallel>], iteration_bounds = array<i64: 13>, scalar_prefetch = 1 : i64, scratch_operands = 0 : i64, tpu.core_type = #tpu.core_type<tc>, window_params = [{pipeline_mode = #tpu.pipeline_mode<synchronous>, transform_indices = @transform_0, window_bounds = array<i64: 7, 8, 256>}, {transform_indices = @transform_1, window_bounds = array<i64: 256, 1024>}, {transform_indices = @transform_2, window_bounds = array<i64: 1, 1024>}, {transform_indices = @transform_3, window_bounds = array<i64: 8, 1024>}]} {
    %0 = arith.index_cast %arg0 : i32 to index
    %1 = memref.load %arg1[%0] : memref<13xi32, #tpu.memory_space<smem>>
    %2 = arith.index_cast %1 : i32 to index
    %c0 = arith.constant 0 : index
    %c0_0 = arith.constant 0 : index
    %3 = vector.load %arg2[%2, %c0, %c0_0] : memref<7x8x256xbf16, #tpu.memory_space<vmem>>, vector<1x8x256xbf16>
    %4 = vector.shape_cast %3 : vector<1x8x256xbf16> to vector<8x256xbf16>
    %c0_1 = arith.constant 0 : index
    %c0_2 = arith.constant 0 : index
    %5 = vector.load %arg3[%c0_1, %c0_2] : memref<256x1024xbf16, #tpu.memory_space<vmem>>, vector<256x1024xbf16>
    %cst = arith.constant dense<0.000000e+00> : vector<8x1024xf32>
    %6 = tpu.matmul %4, %5, %cst {dimension_numbers = #tpu.dot_dimension_numbers<[1], [0], [0], [1], [0, 0, 1, 1], [], []>} : vector<8x256xbf16>, vector<256x1024xbf16>, vector<8x1024xf32> -> vector<8x1024xf32>
    %c0_3 = arith.constant 0 : index
    %c0_4 = arith.constant 0 : index
    %7 = vector.load %arg4[%c0_3, %c0_4] : memref<1x1024xf32, #tpu.memory_space<vmem>>, vector<1x1024xf32>
    %8 = vector.broadcast %7 : vector<1x1024xf32> to vector<8x1024xf32>
    %9 = arith.addf %6, %8 : vector<8x1024xf32>
    %c0_5 = arith.constant 0 : index
    %c0_6 = arith.constant 0 : index
    %10 = vector.load %arg5[%c0_5, %c0_6] : memref<8x1024xf32, #tpu.memory_space<vmem>>, vector<8x1024xf32>
    tpu.vector_store %arg5[%c0_5, %c0_6], %9 {strides = array<i32>} : memref<8x1024xf32, #tpu.memory_space<vmem>>, vector<8x1024xf32>,
    return
  }
  func.func @transform_0(%arg0: i32, %arg1: memref<13xi32, #tpu.memory_space<smem>>) -> (i32, i32, i32) {
    %c0_i32 = arith.constant 0 : i32
    %c0_i32_0 = arith.constant 0 : i32
    %c0_i32_1 = arith.constant 0 : i32
    %c0_i32_2 = arith.constant 0 : i32
    return %c0_i32, %c0_i32_0, %c0_i32_1 : i32, i32, i32
  }
  func.func @transform_1(%arg0: i32, %arg1: memref<13xi32, #tpu.memory_space<smem>>) -> (i32, i32) {
    %c0_i32 = arith.constant 0 : i32
    %c0_i32_0 = arith.constant 0 : i32
    return %c0_i32, %arg0 : i32, i32
  }
  func.func @transform_2(%arg0: i32, %arg1: memref<13xi32, #tpu.memory_space<smem>>) -> (i32, i32) {
    %c0_i32 = arith.constant 0 : i32
    %c0_i32_0 = arith.constant 0 : i32
    return %c0_i32, %arg0 : i32, i32
  }
  func.func @transform_3(%arg0: i32, %arg1: memref<13xi32, #tpu.memory_space<smem>>) -> (i32, i32) {
    %c0_i32 = arith.constant 0 : i32
    %c0_i32_0 = arith.constant 0 : i32
    return %c0_i32, %arg0 : i32, i32
  }
}

</mosaic_0001>

<llo_original>
// kernel: tpu_custom_call.1
$region0: #{tpu_custom_call.1}
  #allocation0 [shape = 'u32[]', space=smem, size = 0x4, offset = 0x4, fixed_abs, tag = 'smem constant byte address 0x4 - core index']
  #allocation1 [shape = 'u32[144,128]{1,0:T(1,128)}', space=vmem, size = 0x12000, scoped, tag = 'internal scratch']
  #allocation2 [shape = 's32[1]{0}', space=sflag, size = 0x4, scoped, tag = 'scoped memory for tpu_custom_call.1']
  #allocation3 [shape = 'u8[512]{0}', space=smem, size = 0x200, scoped, tag = 'prefetched SMEM operand 0']
  %s0 = inlined_call_operand.hbm [shape: s32[13], index: 0, kind: input, shape index: {}]
  %s1 = inlined_call_operand.hbm [shape: bf16[7,8,256], index: 1, kind: input, shape index: {}]
  %s2 = inlined_call_operand.hbm [shape: bf16[256,13312], index: 2, kind: input, shape index: {}]
  %s3 = inlined_call_operand.hbm [shape: f32[1,13312], index: 3, kind: input, shape index: {}]
  %s4 = inlined_call_operand.hbm [shape: f32[8,13312], index: 4, kind: output, shape index: {}]
  %s5 = sld [smem:[#allocation0]]
  $region57: #{tpu_custom_call.1} parent=0
    _
  %s7 = ssub.s32 1, %s5
  %s8 = scalar_select 0, %s7, %s5
  %10 = dma.hbm_to_smem %s0, 16, [#allocation3], [#allocation2]
  %11 = dma.done [#allocation2], 16
  %12 = sfence
  $region1: #{tpu_custom_call.1} parent=0
    #allocation4 [shape = 'u8[28672]{0}', space=vmem, size = 0x7000, scoped, tag = 'input window, operand 1, single buffered']
    #allocation5 [shape = 's32[2]{0}', space=sflag, size = 0x8, scoped, tag = 'scoped memory for tpu_custom_call.1']
    #allocation6 [shape = 's32[2]{0}', space=sflag, size = 0x8, scoped, tag = 'scoped memory for tpu_custom_call.1']
    #allocation7 [shape = 'u8[1048576]{0}', space=vmem, size = 0x100000, scoped, tag = 'input window, operand 2']
    #allocation8 [shape = 's32[2]{0}', space=sflag, size = 0x8, scoped, tag = 'scoped memory for tpu_custom_call.1']
    #allocation9 [shape = 'u8[8192]{0}', space=vmem, size = 0x2000, scoped, tag = 'input window, operand 3']
    #allocation10 [shape = 'u8[65536]{0}', space=vmem, size = 0x10000, scoped, tag = 'output window, operand 0']
    %13 = vsyncpa [#allocation5], 0
    %14 = vsyncpa [#allocation8], 0
    %s15 = scalar_lea.sflag [#allocation8], 1
    %16 = vsyncpa %s15, 0
    %17 = vsyncpa [#allocation6], 0
    %s18 = scalar_lea.sflag [#allocation6], 1
    %19 = vsyncpa %s18, 0
    loop: start=0, step=1, limit=15
    $region2: #{tpu_custom_call.1} parent=1 // loop_pre_header
      _
    $region3: #{tpu_custom_call.1} parent=1 // loop_header
      %s21 = sphi 0, %s25
      %p22 = scmp.ge.s32.totalorder %s21, 15
      %s29 = sphi 0, %s29
      %s31 = sphi 0, %s29
      %s32 = sphi 0, %s31
      %s46 = sphi 0, %s32
      %s52 = sphi 0, %s54
      %s55 = sphi 0, %s52
      %s56 = sphi 0, %s55
      %s72 = sphi 0, %s56
      %s78 = sphi 0, %s80
      %s81 = sphi 0, %s78
      %s82 = sphi 0, %s81
      %s98 = sphi 0, %s82
      %s104 = sphi 0, %s106
      %s107 = sphi 0, %s104
      %s108 = sphi 0, %s107
      %s124 = sphi 0, %s108
    $region4: #{tpu_custom_call.1} parent=1 // loop_header_branch
      %24 = sbr.rel (%p22) target = $region8
    $region5: #{tpu_custom_call.1} parent=1 // loop_body
      %s26 = ssub.s32 %s21, 1
      %s27 = ssub.s32 %s21, 2
      %s28 = sadd.s32 %s21, 1
      %s30 = sadd.s32 %s29, 1
      %p33 = scmp.eq.s32.totalorder %s21, 12
      %p34 = scmp.ne.s32.totalorder %s29, %s31
      %p35 = scmp.eq.s32.totalorder %s21, 0
      %p36 = por %p34, %p35
      %p37 = scmp.ne.s32.totalorder %s29, %s31
      %p38 = scmp.eq.s32.totalorder %s26, 12
      %p39 = por %p37, %p38
      %p40 = scmp.ne.s32.totalorder %s31, %s32
      %p41 = scmp.eq.s32.totalorder %s26, 0
      %p42 = por %p40, %p41
      %p43 = scmp.ne.s32.totalorder %s31, %s32
      %p44 = scmp.eq.s32.totalorder %s27, 12
      %p45 = por %p43, %p44
      %p47 = scmp.ne.s32.totalorder %s32, %s46
      %p48 = scmp.eq.s32.totalorder %s27, 0
      %p49 = por %p47, %p48
      %s50 = ssub.s32 %s21, %s28
      %p51 = scmp.eq.s32.totalorder %s50, 0
      %s53 = sadd.s32 %s52, 1
      %s54 = scalar_select %p51, %s52, %s53
      %p57 = pneg %p51
      %p58 = scmp.eq.s32.totalorder %s21, 12
      %p59 = por %p57, %p58
      %p60 = scmp.ne.s32.totalorder %s52, %s55
      %p61 = scmp.eq.s32.totalorder %s21, 0
      %p62 = por %p60, %p61
      %p63 = scmp.ne.s32.totalorder %s52, %s55
      %p64 = scmp.eq.s32.totalorder %s26, 12
      %p65 = por %p63, %p64
      %p66 = scmp.ne.s32.totalorder %s55, %s56
      %p67 = scmp.eq.s32.totalorder %s26, 0
      %p68 = por %p66, %p67
      %p69 = scmp.ne.s32.totalorder %s55, %s56
      %p70 = scmp.eq.s32.totalorder %s27, 12
      %p71 = por %p69, %p70
      %p73 = scmp.ne.s32.totalorder %s56, %s72
      %p74 = scmp.eq.s32.totalorder %s27, 0
      %p75 = por %p73, %p74
      %s76 = ssub.s32 %s21, %s28
      %p77 = scmp.eq.s32.totalorder %s76, 0
      %s79 = sadd.s32 %s78, 1
      %s80 = scalar_select %p77, %s78, %s79
      %p83 = pneg %p77
      %p84 = scmp.eq.s32.totalorder %s21, 12
      %p85 = por %p83, %p84
      %p86 = scmp.ne.s32.totalorder %s78, %s81
      %p87 = scmp.eq.s32.totalorder %s21, 0
      %p88 = por %p86, %p87
      %p89 = scmp.ne.s32.totalorder %s78, %s81
      %p90 = scmp.eq.s32.totalorder %s26, 12
      %p91 = por %p89, %p90
      %p92 = scmp.ne.s32.totalorder %s81, %s82
      %p93 = scmp.eq.s32.totalorder %s26, 0
      %p94 = por %p92, %p93
      %p95 = scmp.ne.s32.totalorder %s81, %s82
      %p96 = scmp.eq.s32.totalorder %s27, 12
      %p97 = por %p95, %p96
      %p99 = scmp.ne.s32.totalorder %s82, %s98
      %p100 = scmp.eq.s32.totalorder %s27, 0
      %p101 = por %p99, %p100
      %s102 = ssub.s32 %s21, %s28
      %p103 = scmp.eq.s32.totalorder %s102, 0
      %s105 = sadd.s32 %s104, 1
      %s106 = scalar_select %p103, %s104, %s105
      %p109 = pneg %p103
      %p110 = scmp.eq.s32.totalorder %s21, 12
      %p111 = por %p109, %p110
      %p112 = scmp.ne.s32.totalorder %s104, %s107
      %p113 = scmp.eq.s32.totalorder %s21, 0
      %p114 = por %p112, %p113
      %p115 = scmp.ne.s32.totalorder %s104, %s107
      %p116 = scmp.eq.s32.totalorder %s26, 12
      %p117 = por %p115, %p116
      %p118 = scmp.ne.s32.totalorder %s107, %s108
      %p119 = scmp.eq.s32.totalorder %s26, 0
      %p120 = por %p118, %p119
      %p121 = scmp.ne.s32.totalorder %s107, %s108
      %p122 = scmp.eq.s32.totalorder %s27, 12
      %p123 = por %p121, %p122
      %p125 = scmp.ne.s32.totalorder %s108, %s124
      %p126 = scmp.eq.s32.totalorder %s27, 0
      %p127 = por %p125, %p126
      %p128 = scmp.le.s32.totalorder 1, %s21
      %p129 = scmp.lt.s32.totalorder %s21, 14
      %p130 = pnand %p128, %p129
      %p131 = pneg %p130
      // Predicated region
      $region9: #{tpu_custom_call.1} parent=5 // pred_check
        _
      $region10: #{tpu_custom_call.1} parent=5 // pred_check_branch
        %133 = sbr.rel (%p130) target = $region12
      $region11: #{tpu_custom_call.1} parent=5 // pred_region
        %s134 = ssub.s32 %s21, 1
        // Predicated region
        $region13: #{tpu_custom_call.1} parent=11 // pred_check
          %p135 = pneg %p42
        $region14: #{tpu_custom_call.1} parent=11 // pred_check_branch
          %137 = sbr.rel (%p135) target = $region16
        $region15: #{tpu_custom_call.1} parent=11 // pred_region
          %s139 = ssub.s32 896, 896
          %140 = vsyncadd [#allocation5], %s139
          %s141 = sshll.u32 [#allocation4], 4
          %s142 = int_to_ptr.vmem [resolvable:$true] %s141
          %147 = dma.hbm_to_vmem [thread:$0]  %s1, 896, %s142, [#allocation5], 128, 128, 8
        $region16: #{tpu_custom_call.1} parent=11 // pred_fallthru
          _
      $region12: #{tpu_custom_call.1} parent=5 // pred_fallthru
        _
      %p148 = scmp.lt.s32.totalorder %s21, 13
      // Predicated region
      $region17: #{tpu_custom_call.1} parent=5 // pred_check
        %p149 = pneg %p148
      $region18: #{tpu_custom_call.1} parent=5 // pred_check_branch
        %151 = sbr.rel (%p149) target = $region20
      $region19: #{tpu_custom_call.1} parent=5 // pred_region
        // Predicated region
        $region21: #{tpu_custom_call.1} parent=19 // pred_check
          %p152 = pneg %p62
        $region22: #{tpu_custom_call.1} parent=19 // pred_check_branch
          %154 = sbr.rel (%p152) target = $region24
        $region23: #{tpu_custom_call.1} parent=19 // pred_region
          %s155 = sand.u32 %s21, 1
          %s156 = scalar_lea.sflag [#allocation8], %s155
          %s157 = sand.u32 %s52, 1
          %s158 = smul.addr %s157, 1024
          %s159 = scalar_lea.vmem [#allocation7], %s158
          %s160 = smul.u32 8, %s21
          %s162 = ssub.s32 16384, 16384
          %163 = vsyncadd %s156, %s162
          %s164 = smul.addr %s160, 64
          %s165 = scalar_lea.hbm %s2, %s164
          %s166 = sshll.u32 %s159, 4
          %s167 = int_to_ptr.vmem [resolvable:$true] %s166
          %172 = dma.hbm_to_vmem [thread:$0]  %s165, 16384, %s167, %s156, 6656, 512, 32
        $region24: #{tpu_custom_call.1} parent=19 // pred_fallthru
          _
        // Predicated region
        $region25: #{tpu_custom_call.1} parent=19 // pred_check
          %p173 = pneg %p88
        $region26: #{tpu_custom_call.1} parent=19 // pred_check_branch
          %175 = sbr.rel (%p173) target = $region28
        $region27: #{tpu_custom_call.1} parent=19 // pred_region
          %s176 = sand.u32 %s21, 1
          %s177 = scalar_lea.sflag [#allocation8], %s176
          %s178 = sand.u32 %s78, 1
          %s179 = smul.addr %s178, 8
          %s180 = scalar_lea.vmem [#allocation9], %s179
          %s181 = smul.u32 8, %s21
          %s183 = ssub.s32 128, 128
          %184 = vsyncadd %s177, %s183
          %s185 = smul.addr %s181, 16
          %s186 = scalar_lea.hbm %s3, %s185
          %s188 = sshll.u32 %s180, 4
          %s189 = int_to_ptr.vmem [resolvable:$true] %s188
          %191 = dma.hbm_to_vmem [thread:$0]  %s186, 128, %s189, %s177
        $region28: #{tpu_custom_call.1} parent=19 // pred_fallthru
          _
      $region20: #{tpu_custom_call.1} parent=5 // pred_fallthru
        _
      %p192 = scmp.le.s32.totalorder 1, %s21
      %p193 = scmp.lt.s32.totalorder %s21, 14
      %p194 = pnand %p192, %p193
      %p195 = pneg %p194
      // Predicated region
      $region29: #{tpu_custom_call.1} parent=5 // pred_check
        _
      $region30: #{tpu_custom_call.1} parent=5 // pred_check_branch
        %197 = sbr.rel (%p194) target = $region32
      $region31: #{tpu_custom_call.1} parent=5 // pred_region
        %s198 = ssub.s32 %s21, 1
        // Predicated region
        $region33: #{tpu_custom_call.1} parent=31 // pred_check
          %p199 = pneg %p42
        $region34: #{tpu_custom_call.1} parent=31 // pred_check_branch
          %201 = sbr.rel (%p199) target = $region36
        $region35: #{tpu_custom_call.1} parent=31 // pred_region
          %202 = dma.done [#allocation5], 896
        $region36: #{tpu_custom_call.1} parent=31 // pred_fallthru
          _
        %s203 = sand.u32 %s26, 1
        %s204 = scalar_lea.sflag [#allocation8], %s203
        %s205 = sand.u32 %s55, 1
        %s206 = smul.addr %s205, 1024
        %s207 = scalar_lea.vmem [#allocation7], %s206
        // Predicated region
        $region37: #{tpu_custom_call.1} parent=31 // pred_check
          %p208 = pneg %p68
        $region38: #{tpu_custom_call.1} parent=31 // pred_check_branch
          %210 = sbr.rel (%p208) target = $region40
        $region39: #{tpu_custom_call.1} parent=31 // pred_region
          %211 = dma.done %s204, 16384
        $region40: #{tpu_custom_call.1} parent=31 // pred_fallthru
          _
        %s212 = sand.u32 %s26, 1
        %s213 = scalar_lea.sflag [#allocation8], %s212
        %s214 = sand.u32 %s81, 1
        %s215 = smul.addr %s214, 8
        %s216 = scalar_lea.vmem [#allocation9], %s215
        // Predicated region
        $region41: #{tpu_custom_call.1} parent=31 // pred_check
          %p217 = pneg %p94
        $region42: #{tpu_custom_call.1} parent=31 // pred_check_branch
          %219 = sbr.rel (%p217) target = $region44
        $region43: #{tpu_custom_call.1} parent=31 // pred_region
          %220 = dma.done %s213, 128
        $region44: #{tpu_custom_call.1} parent=31 // pred_fallthru
          _
        %p221 = pneg %p42
        %p222 = pneg %p39
        %s223 = sand.u32 %s26, 1
        %s224 = scalar_lea.sflag [#allocation8], %s223
        %s225 = sand.u32 %s55, 1
        %s226 = smul.addr %s225, 1024
        %s227 = scalar_lea.vmem [#allocation7], %s226
        %p228 = pneg %p68
        %p229 = pneg %p65
        %s230 = sand.u32 %s26, 1
        %s231 = scalar_lea.sflag [#allocation8], %s230
        %s232 = sand.u32 %s81, 1
        %s233 = smul.addr %s232, 8
        %s234 = scalar_lea.vmem [#allocation9], %s233
        %p235 = pneg %p94
        %p236 = pneg %p91
        %p237 = pneg %p120
        %p238 = pneg %p117
        %s239 = sand.u32 %s107, 1
        %s240 = scalar_lea.sflag [#allocation6], %s239
        %s241 = sand.u32 %s107, 1
        %s242 = smul.addr %s241, 64
        %s243 = scalar_lea.vmem [#allocation10], %s242
        %s244 = smul.u32 8, %s26
        %s245 = smul.u32 8, %s26
        %s246 = smul.u32 8, %s26
        %s247 = sld [smem:[#allocation3 + %s26]]
        %s248 = smul.u32 %s247, 2
        %s249 = smul.addr %s248, 4
        %s250 = scalar_lea.vmem [#allocation4], %s249
        %v251 = vld [vmem:[%s250] sm:$0xff]
        %v252 = vld [vmem:[%s207] sm:$0xff]
        %v253 = vld [vmem:[%s207 + $0x8] sm:$0xff]
        %v254 = vld [vmem:[%s207 + $0x10] sm:$0xff]
        %v255 = vld [vmem:[%s207 + $0x18] sm:$0xff]
        %v256 = vld [vmem:[%s207 + $0x20] sm:$0xff]
        %v257 = vld [vmem:[%s207 + $0x28] sm:$0xff]
        %v258 = vld [vmem:[%s207 + $0x30] sm:$0xff]
        %v259 = vld [vmem:[%s207 + $0x38] sm:$0xff]
        %v260 = vld [vmem:[%s207 + $0x40] sm:$0xff]
        %v261 = vld [vmem:[%s207 + $0x48] sm:$0xff]
        %v262 = vld [vmem:[%s207 + $0x50] sm:$0xff]
        %v263 = vld [vmem:[%s207 + $0x58] sm:$0xff]
        %v264 = vld [vmem:[%s207 + $0x60] sm:$0xff]
        %v265 = vld [vmem:[%s207 + $0x68] sm:$0xff]
        %v266 = vld [vmem:[%s207 + $0x70] sm:$0xff]
        %v267 = vld [vmem:[%s207 + $0x78] sm:$0xff]
        %v268 = vld [vmem:[%s207 + $0x80] sm:$0xff]
        %v269 = vld [vmem:[%s207 + $0x88] sm:$0xff]
        %v270 = vld [vmem:[%s207 + $0x90] sm:$0xff]
        %v271 = vld [vmem:[%s207 + $0x98] sm:$0xff]
        %v272 = vld [vmem:[%s207 + $0xa0] sm:$0xff]
        %v273 = vld [vmem:[%s207 + $0xa8] sm:$0xff]
        %v274 = vld [vmem:[%s207 + $0xb0] sm:$0xff]
        %v275 = vld [vmem:[%s207 + $0xb8] sm:$0xff]
        %v276 = vld [vmem:[%s207 + $0xc0] sm:$0xff]
        %v277 = vld [vmem:[%s207 + $0xc8] sm:$0xff]
        %v278 = vld [vmem:[%s207 + $0xd0] sm:$0xff]
        %v279 = vld [vmem:[%s207 + $0xd8] sm:$0xff]
        %v280 = vld [vmem:[%s207 + $0xe0] sm:$0xff]
        %v281 = vld [vmem:[%s207 + $0xe8] sm:$0xff]
        %v282 = vld [vmem:[%s207 + $0xf0] sm:$0xff]
        %v283 = vld [vmem:[%s207 + $0xf8] sm:$0xff]
        %v284 = vld [vmem:[%s207 + $0x100] sm:$0xff]
        %v285 = vld [vmem:[%s207 + $0x108] sm:$0xff]
        %v286 = vld [vmem:[%s207 + $0x110] sm:$0xff]
        %v287 = vld [vmem:[%s207 + $0x118] sm:$0xff]
        %v288 = vld [vmem:[%s207 + $0x120] sm:$0xff]
        %v289 = vld [vmem:[%s207 + $0x128] sm:$0xff]
        %v290 = vld [vmem:[%s207 + $0x130] sm:$0xff]
        %v291 = vld [vmem:[%s207 + $0x138] sm:$0xff]
        %v292 = vld [vmem:[%s207 + $0x140] sm:$0xff]
        %v293 = vld [vmem:[%s207 + $0x148] sm:$0xff]
        %v294 = vld [vmem:[%s207 + $0x150] sm:$0xff]
        %v295 = vld [vmem:[%s207 + $0x158] sm:$0xff]
        %v296 = vld [vmem:[%s207 + $0x160] sm:$0xff]
        %v297 = vld [vmem:[%s207 + $0x168] sm:$0xff]
        %v298 = vld [vmem:[%s207 + $0x170] sm:$0xff]
        %v299 = vld [vmem:[%s207 + $0x178] sm:$0xff]
        %v300 = vld [vmem:[%s207 + $0x180] sm:$0xff]
        %v301 = vld [vmem:[%s207 + $0x188] sm:$0xff]
        %v302 = vld [vmem:[%s207 + $0x190] sm:$0xff]
        %v303 = vld [vmem:[%s207 + $0x198] sm:$0xff]
        %v304 = vld [vmem:[%s207 + $0x1a0] sm:$0xff]
        %v305 = vld [vmem:[%s207 + $0x1a8] sm:$0xff]
        %v306 = vld [vmem:[%s207 + $0x1b0] sm:$0xff]
        %v307 = vld [vmem:[%s207 + $0x1b8] sm:$0xff]
        %v308 = vld [vmem:[%s207 + $0x1c0] sm:$0xff]
        %v309 = vld [vmem:[%s207 + $0x1c8] sm:$0xff]
        %v310 = vld [vmem:[%s207 + $0x1d0] sm:$0xff]
        %v311 = vld [vmem:[%s207 + $0x1d8] sm:$0xff]
        %v312 = vld [vmem:[%s207 + $0x1e0] sm:$0xff]
        %v313 = vld [vmem:[%s207 + $0x1e8] sm:$0xff]
        %v314 = vld [vmem:[%s207 + $0x1f0] sm:$0xff]
        %v315 = vld [vmem:[%s207 + $0x1f8] sm:$0xff]
        %v316 = vld [vmem:[%s207 + $0x200] sm:$0xff]
        %v317 = vld [vmem:[%s207 + $0x208] sm:$0xff]
        %v318 = vld [vmem:[%s207 + $0x210] sm:$0xff]
        %v319 = vld [vmem:[%s207 + $0x218] sm:$0xff]
        %v320 = vld [vmem:[%s207 + $0x220] sm:$0xff]
        %v321 = vld [vmem:[%s207 + $0x228] sm:$0xff]
        %v322 = vld [vmem:[%s207 + $0x230] sm:$0xff]
        %v323 = vld [vmem:[%s207 + $0x238] sm:$0xff]
        %v324 = vld [vmem:[%s207 + $0x240] sm:$0xff]
        %v325 = vld [vmem:[%s207 + $0x248] sm:$0xff]
        %v326 = vld [vmem:[%s207 + $0x250] sm:$0xff]
        %v327 = vld [vmem:[%s207 + $0x258] sm:$0xff]
        %v328 = vld [vmem:[%s207 + $0x260] sm:$0xff]
        %v329 = vld [vmem:[%s207 + $0x268] sm:$0xff]
        %v330 = vld [vmem:[%s207 + $0x270] sm:$0xff]
        %v331 = vld [vmem:[%s207 + $0x278] sm:$0xff]
        %v332 = vld [vmem:[%s207 + $0x280] sm:$0xff]
        %v333 = vld [vmem:[%s207 + $0x288] sm:$0xff]
        %v334 = vld [vmem:[%s207 + $0x290] sm:$0xff]
        %v335 = vld [vmem:[%s207 + $0x298] sm:$0xff]
        %v336 = vld [vmem:[%s207 + $0x2a0] sm:$0xff]
        %v337 = vld [vmem:[%s207 + $0x2a8] sm:$0xff]
        %v338 = vld [vmem:[%s207 + $0x2b0] sm:$0xff]
        %v339 = vld [vmem:[%s207 + $0x2b8] sm:$0xff]
        %v340 = vld [vmem:[%s207 + $0x2c0] sm:$0xff]
        %v341 = vld [vmem:[%s207 + $0x2c8] sm:$0xff]
        %v342 = vld [vmem:[%s207 + $0x2d0] sm:$0xff]
        %v343 = vld [vmem:[%s207 + $0x2d8] sm:$0xff]
        %v344 = vld [vmem:[%s207 + $0x2e0] sm:$0xff]
        %v345 = vld [vmem:[%s207 + $0x2e8] sm:$0xff]
        %v346 = vld [vmem:[%s207 + $0x2f0] sm:$0xff]
        %v347 = vld [vmem:[%s207 + $0x2f8] sm:$0xff]
        %v348 = vld [vmem:[%s207 + $0x300] sm:$0xff]
        %v349 = vld [vmem:[%s207 + $0x308] sm:$0xff]
        %v350 = vld [vmem:[%s207 + $0x310] sm:$0xff]
        %v351 = vld [vmem:[%s207 + $0x318] sm:$0xff]
        %v352 = vld [vmem:[%s207 + $0x320] sm:$0xff]
        %v353 = vld [vmem:[%s207 + $0x328] sm:$0xff]
        %v354 = vld [vmem:[%s207 + $0x330] sm:$0xff]
        %v355 = vld [vmem:[%s207 + $0x338] sm:$0xff]
        %v356 = vld [vmem:[%s207 + $0x340] sm:$0xff]
        %v357 = vld [vmem:[%s207 + $0x348] sm:$0xff]
        %v358 = vld [vmem:[%s207 + $0x350] sm:$0xff]
        %v359 = vld [vmem:[%s207 + $0x358] sm:$0xff]
        %v360 = vld [vmem:[%s207 + $0x360] sm:$0xff]
        %v361 = vld [vmem:[%s207 + $0x368] sm:$0xff]
        %v362 = vld [vmem:[%s207 + $0x370] sm:$0xff]
        %v363 = vld [vmem:[%s207 + $0x378] sm:$0xff]
        %v364 = vld [vmem:[%s207 + $0x380] sm:$0xff]
        %v365 = vld [vmem:[%s207 + $0x388] sm:$0xff]
        %v366 = vld [vmem:[%s207 + $0x390] sm:$0xff]
        %v367 = vld [vmem:[%s207 + $0x398] sm:$0xff]
        %v368 = vld [vmem:[%s207 + $0x3a0] sm:$0xff]
        %v369 = vld [vmem:[%s207 + $0x3a8] sm:$0xff]
        %v370 = vld [vmem:[%s207 + $0x3b0] sm:$0xff]
        %v371 = vld [vmem:[%s207 + $0x3b8] sm:$0xff]
        %v372 = vld [vmem:[%s207 + $0x3c0] sm:$0xff]
        %v373 = vld [vmem:[%s207 + $0x3c8] sm:$0xff]
        %v374 = vld [vmem:[%s207 + $0x3d0] sm:$0xff]
        %v375 = vld [vmem:[%s207 + $0x3d8] sm:$0xff]
        %v376 = vld [vmem:[%s207 + $0x3e0] sm:$0xff]
        %v377 = vld [vmem:[%s207 + $0x3e8] sm:$0xff]
        %v378 = vld [vmem:[%s207 + $0x3f0] sm:$0xff]
        %v379 = vld [vmem:[%s207 + $0x3f8] sm:$0xff]
        %v380 = vld [vmem:[%s216] sm:$0xff]
        %v382 = vlaneseq
        %v383 = vshrl.u32 %v382, 7
        %v384 = vsub.s32 0, %v383
        %v385 = vrot.slane %v380, %v384
        %v386 = vlaneseq
        %v387 = vshrl.u32 %v386, 7
        %v388 = vsub.s32 1, %v387
        %v389 = vrot.slane %v380, %v388
        %v390 = vlaneseq
        %v391 = vshrl.u32 %v390, 7
        %v392 = vsub.s32 2, %v391
        %v393 = vrot.slane %v380, %v392
        %v394 = vlaneseq
        %v395 = vshrl.u32 %v394, 7
        %v396 = vsub.s32 3, %v395
        %v397 = vrot.slane %v380, %v396
        %v398 = vlaneseq
        %v399 = vshrl.u32 %v398, 7
        %v400 = vsub.s32 4, %v399
        %v401 = vrot.slane %v380, %v400
        %v402 = vlaneseq
        %v403 = vshrl.u32 %v402, 7
        %v404 = vsub.s32 5, %v403
        %v405 = vrot.slane %v380, %v404
        %v406 = vlaneseq
        %v407 = vshrl.u32 %v406, 7
        %v408 = vsub.s32 6, %v407
        %v409 = vrot.slane %v380, %v408
        %v410 = vlaneseq
        %v411 = vshrl.u32 %v410, 7
        %v412 = vsub.s32 7, %v411
        %v413 = vrot.slane %v380, %v412
        %v423 = vunpack.c.l.b16 %v251
        %v424 = vunpack.c.h.b16 %v251
        %v425 = vpack.c.b16 %v423, %v423
        %v426 = vpack.c.b16 %v424, %v424
        %v557 = vunpack.c.l.b16 %v252
        %v558 = vunpack.c.h.b16 %v252
        %v559 = vunpack.c.l.b16 %v253
        %v560 = vunpack.c.h.b16 %v253
        %v561 = vunpack.c.l.b16 %v254
        %v562 = vunpack.c.h.b16 %v254
        %v563 = vunpack.c.l.b16 %v255
        %v564 = vunpack.c.h.b16 %v255
        %v565 = vunpack.c.l.b16 %v256
        %v566 = vunpack.c.h.b16 %v256
        %v567 = vunpack.c.l.b16 %v257
        %v568 = vunpack.c.h.b16 %v257
        %v569 = vunpack.c.l.b16 %v258
        %v570 = vunpack.c.h.b16 %v258
        %v571 = vunpack.c.l.b16 %v259
        %v572 = vunpack.c.h.b16 %v259
        %v573 = vunpack.c.l.b16 %v260
        %v574 = vunpack.c.h.b16 %v260
        %v575 = vunpack.c.l.b16 %v261
        %v576 = vunpack.c.h.b16 %v261
        %v577 = vunpack.c.l.b16 %v262
        %v578 = vunpack.c.h.b16 %v262
        %v579 = vunpack.c.l.b16 %v263
        %v580 = vunpack.c.h.b16 %v263
        %v581 = vunpack.c.l.b16 %v264
        %v582 = vunpack.c.h.b16 %v264
        %v583 = vunpack.c.l.b16 %v265
        %v584 = vunpack.c.h.b16 %v265
        %v585 = vunpack.c.l.b16 %v266
        %v586 = vunpack.c.h.b16 %v266
        %v587 = vunpack.c.l.b16 %v267
        %v588 = vunpack.c.h.b16 %v267
        %v589 = vunpack.c.l.b16 %v268
        %v590 = vunpack.c.h.b16 %v268
        %v591 = vunpack.c.l.b16 %v269
        %v592 = vunpack.c.h.b16 %v269
        %v593 = vunpack.c.l.b16 %v270
        %v594 = vunpack.c.h.b16 %v270
        %v595 = vunpack.c.l.b16 %v271
        %v596 = vunpack.c.h.b16 %v271
        %v597 = vunpack.c.l.b16 %v272
        %v598 = vunpack.c.h.b16 %v272
        %v599 = vunpack.c.l.b16 %v273
        %v600 = vunpack.c.h.b16 %v273
        %v601 = vunpack.c.l.b16 %v274
        %v602 = vunpack.c.h.b16 %v274
        %v603 = vunpack.c.l.b16 %v275
        %v604 = vunpack.c.h.b16 %v275
        %v605 = vunpack.c.l.b16 %v276
        %v606 = vunpack.c.h.b16 %v276
        %v607 = vunpack.c.l.b16 %v277
        %v608 = vunpack.c.h.b16 %v277
        %v609 = vunpack.c.l.b16 %v278
        %v610 = vunpack.c.h.b16 %v278
        %v611 = vunpack.c.l.b16 %v279
        %v612 = vunpack.c.h.b16 %v279
        %v613 = vunpack.c.l.b16 %v280
        %v614 = vunpack.c.h.b16 %v280
        %v615 = vunpack.c.l.b16 %v281
        %v616 = vunpack.c.h.b16 %v281
        %v617 = vunpack.c.l.b16 %v282
        %v618 = vunpack.c.h.b16 %v282
        %v619 = vunpack.c.l.b16 %v283
        %v620 = vunpack.c.h.b16 %v283
        %v621 = vunpack.c.l.b16 %v284
        %v622 = vunpack.c.h.b16 %v284
        %v623 = vunpack.c.l.b16 %v285
        %v624 = vunpack.c.h.b16 %v285
        %v625 = vunpack.c.l.b16 %v286
        %v626 = vunpack.c.h.b16 %v286
        %v627 = vunpack.c.l.b16 %v287
        %v628 = vunpack.c.h.b16 %v287
        %v629 = vunpack.c.l.b16 %v288
        %v630 = vunpack.c.h.b16 %v288
        %v631 = vunpack.c.l.b16 %v289
        %v632 = vunpack.c.h.b16 %v289
        %v633 = vunpack.c.l.b16 %v290
        %v634 = vunpack.c.h.b16 %v290
        %v635 = vunpack.c.l.b16 %v291
        %v636 = vunpack.c.h.b16 %v291
        %v637 = vunpack.c.l.b16 %v292
        %v638 = vunpack.c.h.b16 %v292
        %v639 = vunpack.c.l.b16 %v293
        %v640 = vunpack.c.h.b16 %v293
        %v641 = vunpack.c.l.b16 %v294
        %v642 = vunpack.c.h.b16 %v294
        %v643 = vunpack.c.l.b16 %v295
        %v644 = vunpack.c.h.b16 %v295
        %v645 = vunpack.c.l.b16 %v296
        %v646 = vunpack.c.h.b16 %v296
        %v647 = vunpack.c.l.b16 %v297
        %v648 = vunpack.c.h.b16 %v297
        %v649 = vunpack.c.l.b16 %v298
        %v650 = vunpack.c.h.b16 %v298
        %v651 = vunpack.c.l.b16 %v299
        %v652 = vunpack.c.h.b16 %v299
        %v653 = vunpack.c.l.b16 %v300
        %v654 = vunpack.c.h.b16 %v300
        %v655 = vunpack.c.l.b16 %v301
        %v656 = vunpack.c.h.b16 %v301
        %v657 = vunpack.c.l.b16 %v302
        %v658 = vunpack.c.h.b16 %v302
        %v659 = vunpack.c.l.b16 %v303
        %v660 = vunpack.c.h.b16 %v303
        %v661 = vunpack.c.l.b16 %v304
        %v662 = vunpack.c.h.b16 %v304
        %v663 = vunpack.c.l.b16 %v305
        %v664 = vunpack.c.h.b16 %v305
        %v665 = vunpack.c.l.b16 %v306
        %v666 = vunpack.c.h.b16 %v306
        %v667 = vunpack.c.l.b16 %v307
        %v668 = vunpack.c.h.b16 %v307
        %v669 = vunpack.c.l.b16 %v308
        %v670 = vunpack.c.h.b16 %v308
        %v671 = vunpack.c.l.b16 %v309
        %v672 = vunpack.c.h.b16 %v309
        %v673 = vunpack.c.l.b16 %v310
        %v674 = vunpack.c.h.b16 %v310
        %v675 = vunpack.c.l.b16 %v311
        %v676 = vunpack.c.h.b16 %v311
        %v677 = vunpack.c.l.b16 %v312
        %v678 = vunpack.c.h.b16 %v312
        %v679 = vunpack.c.l.b16 %v313
        %v680 = vunpack.c.h.b16 %v313
        %v681 = vunpack.c.l.b16 %v314
        %v682 = vunpack.c.h.b16 %v314
        %v683 = vunpack.c.l.b16 %v315
        %v684 = vunpack.c.h.b16 %v315
        %v685 = vunpack.c.l.b16 %v316
        %v686 = vunpack.c.h.b16 %v316
        %v687 = vunpack.c.l.b16 %v317
        %v688 = vunpack.c.h.b16 %v317
        %v689 = vunpack.c.l.b16 %v318
        %v690 = vunpack.c.h.b16 %v318
        %v691 = vunpack.c.l.b16 %v319
        %v692 = vunpack.c.h.b16 %v319
        %v693 = vunpack.c.l.b16 %v320
        %v694 = vunpack.c.h.b16 %v320
        %v695 = vunpack.c.l.b16 %v321
        %v696 = vunpack.c.h.b16 %v321
        %v697 = vunpack.c.l.b16 %v322
        %v698 = vunpack.c.h.b16 %v322
        %v699 = vunpack.c.l.b16 %v323
        %v700 = vunpack.c.h.b16 %v323
        %v701 = vunpack.c.l.b16 %v324
        %v702 = vunpack.c.h.b16 %v324
        %v703 = vunpack.c.l.b16 %v325
        %v704 = vunpack.c.h.b16 %v325
        %v705 = vunpack.c.l.b16 %v326
        %v706 = vunpack.c.h.b16 %v326
        %v707 = vunpack.c.l.b16 %v327
        %v708 = vunpack.c.h.b16 %v327
        %v709 = vunpack.c.l.b16 %v328
        %v710 = vunpack.c.h.b16 %v328
        %v711 = vunpack.c.l.b16 %v329
        %v712 = vunpack.c.h.b16 %v329
        %v713 = vunpack.c.l.b16 %v330
        %v714 = vunpack.c.h.b16 %v330
        %v715 = vunpack.c.l.b16 %v331
        %v716 = vunpack.c.h.b16 %v331
        %v717 = vunpack.c.l.b16 %v332
        %v718 = vunpack.c.h.b16 %v332
        %v719 = vunpack.c.l.b16 %v333
        %v720 = vunpack.c.h.b16 %v333
        %v721 = vunpack.c.l.b16 %v334
        %v722 = vunpack.c.h.b16 %v334
        %v723 = vunpack.c.l.b16 %v335
        %v724 = vunpack.c.h.b16 %v335
        %v725 = vunpack.c.l.b16 %v336
        %v726 = vunpack.c.h.b16 %v336
        %v727 = vunpack.c.l.b16 %v337
        %v728 = vunpack.c.h.b16 %v337
        %v729 = vunpack.c.l.b16 %v338
        %v730 = vunpack.c.h.b16 %v338
        %v731 = vunpack.c.l.b16 %v339
        %v732 = vunpack.c.h.b16 %v339
        %v733 = vunpack.c.l.b16 %v340
        %v734 = vunpack.c.h.b16 %v340
        %v735 = vunpack.c.l.b16 %v341
        %v736 = vunpack.c.h.b16 %v341
        %v737 = vunpack.c.l.b16 %v342
        %v738 = vunpack.c.h.b16 %v342
        %v739 = vunpack.c.l.b16 %v343
        %v740 = vunpack.c.h.b16 %v343
        %v741 = vunpack.c.l.b16 %v344
        %v742 = vunpack.c.h.b16 %v344
        %v743 = vunpack.c.l.b16 %v345
        %v744 = vunpack.c.h.b16 %v345
        %v745 = vunpack.c.l.b16 %v346
        %v746 = vunpack.c.h.b16 %v346
        %v747 = vunpack.c.l.b16 %v347
        %v748 = vunpack.c.h.b16 %v347
        %v749 = vunpack.c.l.b16 %v348
        %v750 = vunpack.c.h.b16 %v348
        %v751 = vunpack.c.l.b16 %v349
        %v752 = vunpack.c.h.b16 %v349
        %v753 = vunpack.c.l.b16 %v350
        %v754 = vunpack.c.h.b16 %v350
        %v755 = vunpack.c.l.b16 %v351
        %v756 = vunpack.c.h.b16 %v351
        %v757 = vunpack.c.l.b16 %v352
        %v758 = vunpack.c.h.b16 %v352
        %v759 = vunpack.c.l.b16 %v353
        %v760 = vunpack.c.h.b16 %v353
        %v761 = vunpack.c.l.b16 %v354
        %v762 = vunpack.c.h.b16 %v354
        %v763 = vunpack.c.l.b16 %v355
        %v764 = vunpack.c.h.b16 %v355
        %v765 = vunpack.c.l.b16 %v356
        %v766 = vunpack.c.h.b16 %v356
        %v767 = vunpack.c.l.b16 %v357
        %v768 = vunpack.c.h.b16 %v357
        %v769 = vunpack.c.l.b16 %v358
        %v770 = vunpack.c.h.b16 %v358
        %v771 = vunpack.c.l.b16 %v359
        %v772 = vunpack.c.h.b16 %v359
        %v773 = vunpack.c.l.b16 %v360
        %v774 = vunpack.c.h.b16 %v360
        %v775 = vunpack.c.l.b16 %v361
        %v776 = vunpack.c.h.b16 %v361
        %v777 = vunpack.c.l.b16 %v362
        %v778 = vunpack.c.h.b16 %v362
        %v779 = vunpack.c.l.b16 %v363
        %v780 = vunpack.c.h.b16 %v363
        %v781 = vunpack.c.l.b16 %v364
        %v782 = vunpack.c.h.b16 %v364
        %v783 = vunpack.c.l.b16 %v365
        %v784 = vunpack.c.h.b16 %v365
        %v785 = vunpack.c.l.b16 %v366
        %v786 = vunpack.c.h.b16 %v366
        %v787 = vunpack.c.l.b16 %v367
        %v788 = vunpack.c.h.b16 %v367
        %v789 = vunpack.c.l.b16 %v368
        %v790 = vunpack.c.h.b16 %v368
        %v791 = vunpack.c.l.b16 %v369
        %v792 = vunpack.c.h.b16 %v369
        %v793 = vunpack.c.l.b16 %v370
        %v794 = vunpack.c.h.b16 %v370
        %v795 = vunpack.c.l.b16 %v371
        %v796 = vunpack.c.h.b16 %v371
        %v797 = vunpack.c.l.b16 %v372
        %v798 = vunpack.c.h.b16 %v372
        %v799 = vunpack.c.l.b16 %v373
        %v800 = vunpack.c.h.b16 %v373
        %v801 = vunpack.c.l.b16 %v374
        %v802 = vunpack.c.h.b16 %v374
        %v803 = vunpack.c.l.b16 %v375
        %v804 = vunpack.c.h.b16 %v375
        %v805 = vunpack.c.l.b16 %v376
        %v806 = vunpack.c.h.b16 %v376
        %v807 = vunpack.c.l.b16 %v377
        %v808 = vunpack.c.h.b16 %v377
        %v809 = vunpack.c.l.b16 %v378
        %v810 = vunpack.c.h.b16 %v378
        %v811 = vunpack.c.l.b16 %v379
        %v812 = vunpack.c.h.b16 %v379
        %v813 = vpack.c.b16 %v565, %v557
        %v814 = vpack.c.b16 %v566, %v558
        %v815 = vpack.c.b16 %v567, %v559
        %v816 = vpack.c.b16 %v568, %v560
        %v817 = vpack.c.b16 %v569, %v561
        %v818 = vpack.c.b16 %v570, %v562
        %v819 = vpack.c.b16 %v571, %v563
        %v820 = vpack.c.b16 %v572, %v564
        %v821 = vpack.c.b16 %v581, %v573
        %v822 = vpack.c.b16 %v582, %v574
        %v823 = vpack.c.b16 %v583, %v575
        %v824 = vpack.c.b16 %v584, %v576
        %v825 = vpack.c.b16 %v585, %v577
        %v826 = vpack.c.b16 %v586, %v578
        %v827 = vpack.c.b16 %v587, %v579
        %v828 = vpack.c.b16 %v588, %v580
        %v829 = vpack.c.b16 %v597, %v589
        %v830 = vpack.c.b16 %v598, %v590
        %v831 = vpack.c.b16 %v599, %v591
        %v832 = vpack.c.b16 %v600, %v592
        %v833 = vpack.c.b16 %v601, %v593
        %v834 = vpack.c.b16 %v602, %v594
        %v835 = vpack.c.b16 %v603, %v595
        %v836 = vpack.c.b16 %v604, %v596
        %v837 = vpack.c.b16 %v613, %v605
        %v838 = vpack.c.b16 %v614, %v606
        %v839 = vpack.c.b16 %v615, %v607
        %v840 = vpack.c.b16 %v616, %v608
        %v841 = vpack.c.b16 %v617, %v609
        %v842 = vpack.c.b16 %v618, %v610
        %v843 = vpack.c.b16 %v619, %v611
        %v844 = vpack.c.b16 %v620, %v612
        %v845 = vpack.c.b16 %v629, %v621
        %v846 = vpack.c.b16 %v630, %v622
        %v847 = vpack.c.b16 %v631, %v623
        %v848 = vpack.c.b16 %v632, %v624
        %v849 = vpack.c.b16 %v633, %v625
        %v850 = vpack.c.b16 %v634, %v626
        %v851 = vpack.c.b16 %v635, %v627
        %v852 = vpack.c.b16 %v636, %v628
        %v853 = vpack.c.b16 %v645, %v637
        %v854 = vpack.c.b16 %v646, %v638
        %v855 = vpack.c.b16 %v647, %v639
        %v856 = vpack.c.b16 %v648, %v640
        %v857 = vpack.c.b16 %v649, %v641
        %v858 = vpack.c.b16 %v650, %v642
        %v859 = vpack.c.b16 %v651, %v643
        %v860 = vpack.c.b16 %v652, %v644
        %v861 = vpack.c.b16 %v661, %v653
        %v862 = vpack.c.b16 %v662, %v654
        %v863 = vpack.c.b16 %v663, %v655
        %v864 = vpack.c.b16 %v664, %v656
        %v865 = vpack.c.b16 %v665, %v657
        %v866 = vpack.c.b16 %v666, %v658
        %v867 = vpack.c.b16 %v667, %v659
        %v868 = vpack.c.b16 %v668, %v660
        %v869 = vpack.c.b16 %v677, %v669
        %v870 = vpack.c.b16 %v678, %v670
        %v871 = vpack.c.b16 %v679, %v671
        %v872 = vpack.c.b16 %v680, %v672
        %v873 = vpack.c.b16 %v681, %v673
        %v874 = vpack.c.b16 %v682, %v674
        %v875 = vpack.c.b16 %v683, %v675
        %v876 = vpack.c.b16 %v684, %v676
        %v877 = vpack.c.b16 %v693, %v685
        %v878 = vpack.c.b16 %v694, %v686
        %v879 = vpack.c.b16 %v695, %v687
        %v880 = vpack.c.b16 %v696, %v688
        %v881 = vpack.c.b16 %v697, %v689
        %v882 = vpack.c.b16 %v698, %v690
        %v883 = vpack.c.b16 %v699, %v691
        %v884 = vpack.c.b16 %v700, %v692
        %v885 = vpack.c.b16 %v709, %v701
        %v886 = vpack.c.b16 %v710, %v702
        %v887 = vpack.c.b16 %v711, %v703
        %v888 = vpack.c.b16 %v712, %v704
        %v889 = vpack.c.b16 %v713, %v705
        %v890 = vpack.c.b16 %v714, %v706
        %v891 = vpack.c.b16 %v715, %v707
        %v892 = vpack.c.b16 %v716, %v708
        %v893 = vpack.c.b16 %v725, %v717
        %v894 = vpack.c.b16 %v726, %v718
        %v895 = vpack.c.b16 %v727, %v719
        %v896 = vpack.c.b16 %v728, %v720
        %v897 = vpack.c.b16 %v729, %v721
        %v898 = vpack.c.b16 %v730, %v722
        %v899 = vpack.c.b16 %v731, %v723
        %v900 = vpack.c.b16 %v732, %v724
        %v901 = vpack.c.b16 %v741, %v733
        %v902 = vpack.c.b16 %v742, %v734
        %v903 = vpack.c.b16 %v743, %v735
        %v904 = vpack.c.b16 %v744, %v736
        %v905 = vpack.c.b16 %v745, %v737
        %v906 = vpack.c.b16 %v746, %v738
        %v907 = vpack.c.b16 %v747, %v739
        %v908 = vpack.c.b16 %v748, %v740
        %v909 = vpack.c.b16 %v757, %v749
        %v910 = vpack.c.b16 %v758, %v750
        %v911 = vpack.c.b16 %v759, %v751
        %v912 = vpack.c.b16 %v760, %v752
        %v913 = vpack.c.b16 %v761, %v753
        %v914 = vpack.c.b16 %v762, %v754
        %v915 = vpack.c.b16 %v763, %v755
        %v916 = vpack.c.b16 %v764, %v756
        %v917 = vpack.c.b16 %v773, %v765
        %v918 = vpack.c.b16 %v774, %v766
        %v919 = vpack.c.b16 %v775, %v767
        %v920 = vpack.c.b16 %v776, %v768
        %v921 = vpack.c.b16 %v777, %v769
        %v922 = vpack.c.b16 %v778, %v770
        %v923 = vpack.c.b16 %v779, %v771
        %v924 = vpack.c.b16 %v780, %v772
        %v925 = vpack.c.b16 %v789, %v781
        %v926 = vpack.c.b16 %v790, %v782
        %v927 = vpack.c.b16 %v791, %v783
        %v928 = vpack.c.b16 %v792, %v784
        %v929 = vpack.c.b16 %v793, %v785
        %v930 = vpack.c.b16 %v794, %v786
        %v931 = vpack.c.b16 %v795, %v787
        %v932 = vpack.c.b16 %v796, %v788
        %v933 = vpack.c.b16 %v805, %v797
        %v934 = vpack.c.b16 %v806, %v798
        %v935 = vpack.c.b16 %v807, %v799
        %v936 = vpack.c.b16 %v808, %v800
        %v937 = vpack.c.b16 %v809, %v801
        %v938 = vpack.c.b16 %v810, %v802
        %v939 = vpack.c.b16 %v811, %v803
        %v940 = vpack.c.b16 %v812, %v804
        %1069 = vmatprep.subr.bf16.mxu0 %v814
        %1070 = vmatpush1.bf16.msra.mxu0 %v813
        %1071 = vmatprep.subr.bf16.mxu0 %v822
        %1072 = vmatpush1.bf16.msra.mxu0 %v821
        %1073 = vmatprep.subr.bf16.mxu0 %v830
        %1074 = vmatpush1.bf16.msra.mxu0 %v829
        %1075 = vmatprep.subr.bf16.mxu0 %v838
        %1076 = vmatpush1.bf16.msra.mxu0 %v837
        %1077 = vmatprep.subr.bf16.mxu0 %v846
        %1078 = vmatpush1.bf16.msra.mxu0 %v845
        %1079 = vmatprep.subr.bf16.mxu0 %v854
        %1080 = vmatpush1.bf16.msra.mxu0 %v853
        %1081 = vmatprep.subr.bf16.mxu0 %v862
        %1082 = vmatpush1.bf16.msra.mxu0 %v861
        %1083 = vmatprep.subr.bf16.mxu0 %v870
        %1084 = vmatpush1.bf16.msra.mxu0 %v869
        %1085 = vmatprep.subr.bf16.mxu0 %v878
        %1086 = vmatpush1.bf16.msra.mxu0 %v877
        %1087 = vmatprep.subr.bf16.mxu0 %v886
        %1088 = vmatpush1.bf16.msra.mxu0 %v885
        %1089 = vmatprep.subr.bf16.mxu0 %v894
        %1090 = vmatpush1.bf16.msra.mxu0 %v893
        %1091 = vmatprep.subr.bf16.mxu0 %v902
        %1092 = vmatpush1.bf16.msra.mxu0 %v901
        %1093 = vmatprep.subr.bf16.mxu0 %v910
        %1094 = vmatpush1.bf16.msra.mxu0 %v909
        %1095 = vmatprep.subr.bf16.mxu0 %v918
        %1096 = vmatpush1.bf16.msra.mxu0 %v917
        %1097 = vmatprep.subr.bf16.mxu0 %v926
        %1098 = vmatpush1.bf16.msra.mxu0 %v925
        %1099 = vmatprep.subr.bf16.mxu0 %v934
        %1100 = vmatpush1.bf16.msra.mxu0 %v933
        %1101 = vmatprep.mubr.bf16.mxu0 %v426
        %1102 = vmatmul.mubr.bf16.gmra.mrb[0].mxu0 %v425
        %v1103 = vpop.f32.mrb[0].mxu0
        %v1104 = vadd.f32 %v385, %v1103
        %v1105 = vpop.f32.mrb[0].mxu0
        %v1106 = vadd.f32 %v389, %v1105
        %v1107 = vpop.f32.mrb[0].mxu0
        %v1108 = vpop.f32.mrb[0].mxu0
        %1109 = vdwg.mxu0
        %1110 = vmatprep.subr.bf16.mxu0 %v816
        %1111 = vmatpush1.bf16.msra.mxu0 %v815
        %1112 = vmatprep.subr.bf16.mxu0 %v824
        %1113 = vmatpush1.bf16.msra.mxu0 %v823
        %1114 = vmatprep.subr.bf16.mxu0 %v832
        %1115 = vmatpush1.bf16.msra.mxu0 %v831
        %1116 = vmatprep.subr.bf16.mxu0 %v840
        %1117 = vmatpush1.bf16.msra.mxu0 %v839
        %1118 = vmatprep.subr.bf16.mxu0 %v848
        %1119 = vmatpush1.bf16.msra.mxu0 %v847
        %1120 = vmatprep.subr.bf16.mxu0 %v856
        %1121 = vmatpush1.bf16.msra.mxu0 %v855
        %1122 = vmatprep.subr.bf16.mxu0 %v864
        %1123 = vmatpush1.bf16.msra.mxu0 %v863
        %1124 = vmatprep.subr.bf16.mxu0 %v872
        %1125 = vmatpush1.bf16.msra.mxu0 %v871
        %1126 = vmatprep.subr.bf16.mxu0 %v880
        %1127 = vmatpush1.bf16.msra.mxu0 %v879
        %1128 = vmatprep.subr.bf16.mxu0 %v888
        %1129 = vmatpush1.bf16.msra.mxu0 %v887
        %1130 = vmatprep.subr.bf16.mxu0 %v896
        %1131 = vmatpush1.bf16.msra.mxu0 %v895
        %1132 = vmatprep.subr.bf16.mxu0 %v904
        %1133 = vmatpush1.bf16.msra.mxu0 %v903
        %1134 = vmatprep.subr.bf16.mxu0 %v912
        %1135 = vmatpush1.bf16.msra.mxu0 %v911
        %1136 = vmatprep.subr.bf16.mxu0 %v920
        %1137 = vmatpush1.bf16.msra.mxu0 %v919
        %1138 = vmatprep.subr.bf16.mxu0 %v928
        %1139 = vmatpush1.bf16.msra.mxu0 %v927
        %1140 = vmatprep.subr.bf16.mxu0 %v936
        %1141 = vmatpush1.bf16.msra.mxu0 %v935
        %1142 = vmatprep.mubr.bf16.mxu0 %v426
        %1143 = vmatmul.mubr.bf16.gmra.mrb[0].mxu0 %v425
        %v1144 = vpop.f32.mrb[0].mxu0
        %v1145 = vadd.f32 %v393, %v1144
        %v1146 = vpop.f32.mrb[0].mxu0
        %v1147 = vadd.f32 %v397, %v1146
        %v1148 = vpop.f32.mrb[0].mxu0
        %v1149 = vpop.f32.mrb[0].mxu0
        %1150 = vdwg.mxu0
        %1151 = vmatprep.subr.bf16.mxu0 %v818
        %1152 = vmatpush1.bf16.msra.mxu0 %v817
        %1153 = vmatprep.subr.bf16.mxu0 %v826
        %1154 = vmatpush1.bf16.msra.mxu0 %v825
        %1155 = vmatprep.subr.bf16.mxu0 %v834
        %1156 = vmatpush1.bf16.msra.mxu0 %v833
        %1157 = vmatprep.subr.bf16.mxu0 %v842
        %1158 = vmatpush1.bf16.msra.mxu0 %v841
        %1159 = vmatprep.subr.bf16.mxu0 %v850
        %1160 = vmatpush1.bf16.msra.mxu0 %v849
        %1161 = vmatprep.subr.bf16.mxu0 %v858
        %1162 = vmatpush1.bf16.msra.mxu0 %v857
        %1163 = vmatprep.subr.bf16.mxu0 %v866
        %1164 = vmatpush1.bf16.msra.mxu0 %v865
        %1165 = vmatprep.subr.bf16.mxu0 %v874
        %1166 = vmatpush1.bf16.msra.mxu0 %v873
        %1167 = vmatprep.subr.bf16.mxu0 %v882
        %1168 = vmatpush1.bf16.msra.mxu0 %v881
        %1169 = vmatprep.subr.bf16.mxu0 %v890
        %1170 = vmatpush1.bf16.msra.mxu0 %v889
        %1171 = vmatprep.subr.bf16.mxu0 %v898
        %1172 = vmatpush1.bf16.msra.mxu0 %v897
        %1173 = vmatprep.subr.bf16.mxu0 %v906
        %1174 = vmatpush1.bf16.msra.mxu0 %v905
        %1175 = vmatprep.subr.bf16.mxu0 %v914
        %1176 = vmatpush1.bf16.msra.mxu0 %v913
        %1177 = vmatprep.subr.bf16.mxu0 %v922
        %1178 = vmatpush1.bf16.msra.mxu0 %v921
        %1179 = vmatprep.subr.bf16.mxu0 %v930
        %1180 = vmatpush1.bf16.msra.mxu0 %v929
        %1181 = vmatprep.subr.bf16.mxu0 %v938
        %1182 = vmatpush1.bf16.msra.mxu0 %v937
        %1183 = vmatprep.mubr.bf16.mxu0 %v426
        %1184 = vmatmul.mubr.bf16.gmra.mrb[0].mxu0 %v425
        %v1185 = vpop.f32.mrb[0].mxu0
        %v1186 = vadd.f32 %v401, %v1185
        %v1187 = vpop.f32.mrb[0].mxu0
        %v1188 = vadd.f32 %v405, %v1187
        %v1189 = vpop.f32.mrb[0].mxu0
        %v1190 = vpop.f32.mrb[0].mxu0
        %1191 = vdwg.mxu0
        %1192 = vmatprep.subr.bf16.mxu0 %v820
        %1193 = vmatpush1.bf16.msra.mxu0 %v819
        %1194 = vmatprep.subr.bf16.mxu0 %v828
        %1195 = vmatpush1.bf16.msra.mxu0 %v827
        %1196 = vmatprep.subr.bf16.mxu0 %v836
        %1197 = vmatpush1.bf16.msra.mxu0 %v835
        %1198 = vmatprep.subr.bf16.mxu0 %v844
        %1199 = vmatpush1.bf16.msra.mxu0 %v843
        %1200 = vmatprep.subr.bf16.mxu0 %v852
        %1201 = vmatpush1.bf16.msra.mxu0 %v851
        %1202 = vmatprep.subr.bf16.mxu0 %v860
        %1203 = vmatpush1.bf16.msra.mxu0 %v859
        %1204 = vmatprep.subr.bf16.mxu0 %v868
        %1205 = vmatpush1.bf16.msra.mxu0 %v867
        %1206 = vmatprep.subr.bf16.mxu0 %v876
        %1207 = vmatpush1.bf16.msra.mxu0 %v875
        %1208 = vmatprep.subr.bf16.mxu0 %v884
        %1209 = vmatpush1.bf16.msra.mxu0 %v883
        %1210 = vmatprep.subr.bf16.mxu0 %v892
        %1211 = vmatpush1.bf16.msra.mxu0 %v891
        %1212 = vmatprep.subr.bf16.mxu0 %v900
        %1213 = vmatpush1.bf16.msra.mxu0 %v899
        %1214 = vmatprep.subr.bf16.mxu0 %v908
        %1215 = vmatpush1.bf16.msra.mxu0 %v907
        %1216 = vmatprep.subr.bf16.mxu0 %v916
        %1217 = vmatpush1.bf16.msra.mxu0 %v915
        %1218 = vmatprep.subr.bf16.mxu0 %v924
        %1219 = vmatpush1.bf16.msra.mxu0 %v923
        %1220 = vmatprep.subr.bf16.mxu0 %v932
        %1221 = vmatpush1.bf16.msra.mxu0 %v931
        %1222 = vmatprep.subr.bf16.mxu0 %v940
        %1223 = vmatpush1.bf16.msra.mxu0 %v939
        %1224 = vmatprep.mubr.bf16.mxu0 %v426
        %1225 = vmatmul.mubr.bf16.gmra.mrb[0].mxu0 %v425
        %v1226 = vpop.f32.mrb[0].mxu0
        %v1227 = vadd.f32 %v409, %v1226
        %v1228 = vpop.f32.mrb[0].mxu0
        %v1229 = vadd.f32 %v413, %v1228
        %v1230 = vpop.f32.mrb[0].mxu0
        %v1231 = vpop.f32.mrb[0].mxu0
        %1232 = vdwg.mxu0
        %1233 = vst [vmem:[%s243] sm:$0xff] %v1104
        %1234 = vst [vmem:[%s243 + $0x8] sm:$0xff] %v1106
        %1235 = vst [vmem:[%s243 + $0x10] sm:$0xff] %v1145
        %1236 = vst [vmem:[%s243 + $0x18] sm:$0xff] %v1147
        %1237 = vst [vmem:[%s243 + $0x20] sm:$0xff] %v1186
        %1238 = vst [vmem:[%s243 + $0x28] sm:$0xff] %v1188
        %1239 = vst [vmem:[%s243 + $0x30] sm:$0xff] %v1227
        %1240 = vst [vmem:[%s243 + $0x38] sm:$0xff] %v1229
        %s1241 = sand.u32 %s107, 1
        %s1242 = scalar_lea.sflag [#allocation6], %s1241
        %s1243 = sand.u32 %s107, 1
        %s1244 = smul.addr %s1243, 64
        %s1245 = scalar_lea.vmem [#allocation10], %s1244
        // Predicated region
        $region45: #{tpu_custom_call.1} parent=31 // pred_check
          %p1246 = pneg %p117
        $region46: #{tpu_custom_call.1} parent=31 // pred_check_branch
          %1248 = sbr.rel (%p1246) target = $region48
        $region47: #{tpu_custom_call.1} parent=31 // pred_region
          %s1249 = smul.u32 8, %s26
          %s1251 = ssub.s32 1024, 1024
          %1252 = vsyncadd %s1242, %s1251
          %s1253 = smul.addr %s1249, 128
          %s1254 = scalar_lea.hbm %s4, %s1253
          %s1256 = sshll.u32 %s1245, 4
          %s1257 = int_to_ptr.vmem [resolvable:$true] %s1256
          %1259 = dma.vmem_to_hbm [thread:$0]  %s1257, 1024, %s1254, %s1242
        $region48: #{tpu_custom_call.1} parent=31 // pred_fallthru
          _
      $region32: #{tpu_custom_call.1} parent=5 // pred_fallthru
        _
      %p1260 = scmp.le.s32.totalorder 2, %s21
      // Predicated region
      $region49: #{tpu_custom_call.1} parent=5 // pred_check
        %p1261 = pneg %p1260
      $region50: #{tpu_custom_call.1} parent=5 // pred_check_branch
        %1263 = sbr.rel (%p1261) target = $region52
      $region51: #{tpu_custom_call.1} parent=5 // pred_region
        %s1264 = ssub.s32 %s21, 2
        // Predicated region
        $region53: #{tpu_custom_call.1} parent=51 // pred_check
          %p1265 = pneg %p123
        $region54: #{tpu_custom_call.1} parent=51 // pred_check_branch
          %1267 = sbr.rel (%p1265) target = $region56
        $region55: #{tpu_custom_call.1} parent=51 // pred_region
          %s1268 = sand.u32 %s108, 1
          %s1269 = scalar_lea.sflag [#allocation6], %s1268
          %s1270 = sand.u32 %s108, 1
          %s1271 = smul.addr %s1270, 64
          %s1272 = scalar_lea.vmem [#allocation10], %s1271
          %1273 = dma.done %s1269, 1024
        $region56: #{tpu_custom_call.1} parent=51 // pred_fallthru
          _
      $region52: #{tpu_custom_call.1} parent=5 // pred_fallthru
        _
    $region6: #{tpu_custom_call.1} parent=1 // loop_footer
      %s25 = sadd.s32 1, %s21
    $region7: #{tpu_custom_call.1} parent=1 // loop_footer_branch
      %20 = sbr.rel target = $region3
    $region8: #{tpu_custom_call.1} parent=1 // loop_exit
      _
    %1274 = vsyncpa [#allocation5], 1
    %s1275 = scalar_lea.sflag [#allocation5], 1
    %1276 = vsyncpa %s1275, 1
    %1277 = vsyncpa [#allocation8], 1
    %s1278 = scalar_lea.sflag [#allocation8], 1
    %1279 = vsyncpa %s1278, 1
    %1280 = vsyncpa [#allocation6], 1
    %s1281 = scalar_lea.sflag [#allocation6], 1
    %1282 = vsyncpa %s1281, 1

</llo_original>
